<compile_context>
chip_gen: v7x
topology: tpu7x:2x2x1
jax: 0.10.0
libtpu: 0.0.40
codegen_flags: <defaults>
</compile_context>

<pallas_src>
import jax
import jax.numpy as jnp
from jax.experimental import pallas as pl
from jax.experimental.pallas import tpu as pltpu

OUT_FEATURES = 10
OUT_PAD = 128  # lane-dense padded output width


def _round_up(n, m):
    return ((n + m - 1) // m) * m


def mlp2_kernel(x_ref, w1_ref, b1_ref, w2_ref, b2_ref, o_ref):
    # x_ref: (tm, K) f32 ; w1_ref: (K, N1) bf16 ; b1_ref: (1, N1) f32
    # w2_ref: (N1, OUT_PAD) bf16 (out dim zero-padded 10->128) ; b2_ref: (1, OUT_PAD) f32
    x = x_ref[...].astype(jnp.bfloat16)            # in-kernel cast; x streamed as f32
    h = jnp.dot(x, w1_ref[...], preferred_element_type=jnp.float32)
    h = jnp.maximum(h + b1_ref[...], 0.0)          # bias + ReLU in f32
    h = h.astype(jnp.bfloat16)                     # bf16 only as MXU input
    o = jnp.dot(h, w2_ref[...], preferred_element_type=jnp.float32)
    o_ref[...] = (o + b2_ref[...]).astype(o_ref.dtype)   # bf16 lane-dense store


def mlp_2layer_forward(x_nchw, params):
    """x_nchw: (B, C, H, W) float32.

    params: ((w1_t, b1), (w2_t_padded, b2_padded)); weights stored (in, out) in
    bf16, biases f32, layer-2 out dim already zero-padded to OUT_PAD lanes.
    Returns (B, 10) bfloat16 logits (mixed-precision contract)."""
    (w1, b1), (w2, b2) = params
    B = x_nchw.shape[0]
    x2d = x_nchw.reshape(B, -1)          # stays f32; bf16 cast happens in-kernel
    K = x2d.shape[1]
    N1 = w1.shape[1]

    # Batch tile: big tiles (HBM-roofline friendly) but >=2 grid steps when
    # B >= 16 so the "parallel" batch axis can be split across v7x's 2 TCs.
    # x is f32 at the kernel boundary, so a multiple-of-8 sublane tile is enough.
    if B >= 16:
        tm = min(512, _round_up(pl.cdiv(B, 2), 8))
    else:
        tm = max(8, _round_up(B, 8))
    grid = (pl.cdiv(B, tm),)

    cost = pl.CostEstimate(
        flops=2 * B * (K * N1 + N1 * OUT_PAD),
        transcendentals=0,
        bytes_accessed=(B * K * 4             # x (f32)
                        + K * N1 * 2          # w1 (bf16)
                        + N1 * 4              # b1 (f32)
                        + N1 * OUT_PAD * 2    # w2 (bf16)
                        + OUT_PAD * 4         # b2 (f32)
                        + B * OUT_PAD * 2))   # output (bf16)

    out = pl.pallas_call(
        mlp2_kernel,
        out_shape=jax.ShapeDtypeStruct((B, OUT_PAD), jnp.bfloat16),
        grid_spec=pltpu.PrefetchScalarGridSpec(
            num_scalar_prefetch=0,
            grid=grid,
            in_specs=[
                pl.BlockSpec((tm, K), lambda i: (i, 0)),        # x tile (streamed)
                pl.BlockSpec((K, N1), lambda i: (0, 0)),        # w1 (VMEM-resident)
                pl.BlockSpec((1, N1), lambda i: (0, 0)),        # b1 (VMEM-resident)
                pl.BlockSpec((N1, OUT_PAD), lambda i: (0, 0)),  # w2 (VMEM-resident)
                pl.BlockSpec((1, OUT_PAD), lambda i: (0, 0)),   # b2 (VMEM-resident)
            ],
            out_specs=pl.BlockSpec((tm, OUT_PAD), lambda i: (i, 0)),
        ),
        compiler_params=pltpu.CompilerParams(
            dimension_semantics=("parallel",)),
        cost_estimate=cost,
    )(x2d, w1, b1, w2, b2)

    return out[:, :OUT_FEATURES]


def init_params(key, in_features, width=1):
    """Deterministic init mirroring nn.Linear default (uniform +/- 1/sqrt(fan_in)).

    Weights are stored transposed (in, out) and cast to bf16; layer-2 weight and
    bias are zero-padded on the output dim to OUT_PAD lanes. Biases stay f32.
    """
    dims = [in_features, 256 * width, OUT_FEATURES]
    raw = []
    for i in range(2):
        fan_in, fan_out = dims[i], dims[i + 1]
        key, kw, kb = jax.random.split(key, 3)
        bound = 1.0 / jnp.sqrt(jnp.float32(fan_in))
        w_t = jax.random.uniform(kw, (fan_in, fan_out), jnp.float32,
                                 minval=-bound, maxval=bound)
        b = jax.random.uniform(kb, (1, fan_out), jnp.float32,
                               minval=-bound, maxval=bound)
        raw.append((w_t, b))

    (w1, b1), (w2, b2) = raw
    w1 = w1.astype(jnp.bfloat16)
    w2p = jnp.zeros((w2.shape[0], OUT_PAD), jnp.bfloat16).at[:, :OUT_FEATURES].set(
        w2.astype(jnp.bfloat16))
    b2p = jnp.zeros((1, OUT_PAD), jnp.float32).at[:, :OUT_FEATURES].set(b2)
    return ((w1, b1), (w2p, b2p)), raw


if __name__ == "__main__":
    B, C, H, W = 2, 4, 16, 16  # in_ch=4, in_dim=16 -> 1024 input features
    key = jax.random.PRNGKey(0)
    key, kx = jax.random.split(key)
    x = jax.random.normal(kx, (B, C, H, W), jnp.float32)

    params, raw_params = init_params(key, C * H * W, width=1)

    out = mlp_2layer_forward(x, params)
    out = jax.block_until_ready(out)

    # Mixed-precision reference matching the kernel's numerics
    # (bf16 MXU inputs, f32 accumulation, f32 bias/ReLU, bf16-rounded output).
    (w1, b1), (w2, b2) = params
    x2d = x.reshape(B, -1)
    ref_h = jnp.maximum(
        jnp.dot(x2d.astype(jnp.bfloat16), w1,
                preferred_element_type=jnp.float32) + b1, 0.0)
    ref = (jnp.dot(ref_h.astype(jnp.bfloat16), w2,
                   preferred_element_type=jnp.float32) + b2)[:, :OUT_FEATURES]

    # Pure-f32 reference (original PyTorch semantics) for a looser sanity check.
    (rw1, rb1), (rw2, rb2) = raw_params
    ref_f32 = jnp.maximum(x.reshape(B, -1) @ rw1 + rb1, 0.0) @ rw2 + rb2

    assert out.shape == (B, OUT_FEATURES)
    assert out.dtype == jnp.bfloat16
    out_f32 = out.astype(jnp.float32)
    assert jnp.allclose(out_f32, ref, atol=2e-2, rtol=2e-2)
    assert jnp.allclose(out_f32, ref_f32, atol=2e-1, rtol=2e-1)

    print("KERNEL_OK")
</pallas_src>

<mosaic_0001>
module attributes {stable_mosaic.version = 11 : i64} {
  func.func @mlp2_kernel(%arg0: i32, %arg1: memref<8x1024xf32, #tpu.memory_space<vmem>>, %arg2: memref<1024x256xbf16, #tpu.memory_space<vmem>>, %arg3: memref<1x256xf32, #tpu.memory_space<vmem>>, %arg4: memref<256x128xbf16, #tpu.memory_space<vmem>>, %arg5: memref<1x128xf32, #tpu.memory_space<vmem>>, %arg6: memref<8x128xbf16, #tpu.memory_space<vmem>>) attributes {dimension_semantics = [#tpu.dimension_semantics<parallel>], iteration_bounds = array<i64: 1>, scalar_prefetch = 0 : i64, scratch_operands = 0 : i64, tpu.core_type = #tpu.core_type<tc>, window_params = [{transform_indices = @transform_0, window_bounds = array<i64: 8, 1024>}, {pipeline_mode = #tpu.pipeline_mode<synchronous>, transform_indices = @transform_1, window_bounds = array<i64: 1024, 256>}, {pipeline_mode = #tpu.pipeline_mode<synchronous>, transform_indices = @transform_2, window_bounds = array<i64: 1, 256>}, {pipeline_mode = #tpu.pipeline_mode<synchronous>, transform_indices = @transform_3, window_bounds = array<i64: 256, 128>}, {pipeline_mode = #tpu.pipeline_mode<synchronous>, transform_indices = @transform_4, window_bounds = array<i64: 1, 128>}, {transform_indices = @transform_5, window_bounds = array<i64: 8, 128>}]} {
    %c0 = arith.constant 0 : index
    %c0_0 = arith.constant 0 : index
    %0 = vector.load %arg1[%c0, %c0_0] : memref<8x1024xf32, #tpu.memory_space<vmem>>, vector<8x1024xf32>
    %1 = arith.truncf %0 : vector<8x1024xf32> to vector<8x1024xbf16>
    %c0_1 = arith.constant 0 : index
    %c0_2 = arith.constant 0 : index
    %2 = vector.load %arg2[%c0_1, %c0_2] : memref<1024x256xbf16, #tpu.memory_space<vmem>>, vector<1024x256xbf16>
    %cst = arith.constant dense<0.000000e+00> : vector<8x256xf32>
    %3 = tpu.matmul %1, %2, %cst {dimension_numbers = #tpu.dot_dimension_numbers<[1], [0], [0], [1], [0, 0, 1, 1], [], []>} : vector<8x1024xbf16>, vector<1024x256xbf16>, vector<8x256xf32> -> vector<8x256xf32>
    %c0_3 = arith.constant 0 : index
    %c0_4 = arith.constant 0 : index
    %4 = vector.load %arg3[%c0_3, %c0_4] : memref<1x256xf32, #tpu.memory_space<vmem>>, vector<1x256xf32>
    %5 = vector.broadcast %4 : vector<1x256xf32> to vector<8x256xf32>
    %6 = arith.addf %3, %5 : vector<8x256xf32>
    %cst_5 = arith.constant 0.000000e+00 : f32
    %7 = vector.broadcast %cst_5 : f32 to vector<8x256xf32>
    %8 = arith.maximumf %6, %7 : vector<8x256xf32>
    %9 = arith.truncf %8 : vector<8x256xf32> to vector<8x256xbf16>
    %c0_6 = arith.constant 0 : index
    %c0_7 = arith.constant 0 : index
    %10 = vector.load %arg4[%c0_6, %c0_7] : memref<256x128xbf16, #tpu.memory_space<vmem>>, vector<256x128xbf16>
    %cst_8 = arith.constant dense<0.000000e+00> : vector<8x128xf32>
    %11 = tpu.matmul %9, %10, %cst_8 {dimension_numbers = #tpu.dot_dimension_numbers<[1], [0], [0], [1], [0, 0, 1, 1], [], []>} : vector<8x256xbf16>, vector<256x128xbf16>, vector<8x128xf32> -> vector<8x128xf32>
    %c0_9 = arith.constant 0 : index
    %c0_10 = arith.constant 0 : index
    %12 = vector.load %arg5[%c0_9, %c0_10] : memref<1x128xf32, #tpu.memory_space<vmem>>, vector<1x128xf32>
    %13 = vector.broadcast %12 : vector<1x128xf32> to vector<8x128xf32>
    %14 = arith.addf %11, %13 : vector<8x128xf32>
    %15 = arith.truncf %14 : vector<8x128xf32> to vector<8x128xbf16>
    %c0_11 = arith.constant 0 : index
    %c0_12 = arith.constant 0 : index
    %16 = vector.load %arg6[%c0_11, %c0_12] : memref<8x128xbf16, #tpu.memory_space<vmem>>, vector<8x128xbf16>
    tpu.vector_store %arg6[%c0_11, %c0_12], %15 {strides = array<i32>} : memref<8x128xbf16, #tpu.memory_space<vmem>>, vector<8x128xbf16>,
    return
  }
  func.func @transform_0(%arg0: i32) -> (i32, i32) {
    %c0_i32 = arith.constant 0 : i32
    %c0_i32_0 = arith.constant 0 : i32
    return %arg0, %c0_i32 : i32, i32
  }
  func.func @transform_1(%arg0: i32) -> (i32, i32) {
    %c0_i32 = arith.constant 0 : i32
    %c0_i32_0 = arith.constant 0 : i32
    %c0_i32_1 = arith.constant 0 : i32
    return %c0_i32, %c0_i32_0 : i32, i32
  }
  func.func @transform_2(%arg0: i32) -> (i32, i32) {
    %c0_i32 = arith.constant 0 : i32
    %c0_i32_0 = arith.constant 0 : i32
    %c0_i32_1 = arith.constant 0 : i32
    return %c0_i32, %c0_i32_0 : i32, i32
  }
  func.func @transform_3(%arg0: i32) -> (i32, i32) {
    %c0_i32 = arith.constant 0 : i32
    %c0_i32_0 = arith.constant 0 : i32
    %c0_i32_1 = arith.constant 0 : i32
    return %c0_i32, %c0_i32_0 : i32, i32
  }
  func.func @transform_4(%arg0: i32) -> (i32, i32) {
    %c0_i32 = arith.constant 0 : i32
    %c0_i32_0 = arith.constant 0 : i32
    %c0_i32_1 = arith.constant 0 : i32
    return %c0_i32, %c0_i32_0 : i32, i32
  }
  func.func @transform_5(%arg0: i32) -> (i32, i32) {
    %c0_i32 = arith.constant 0 : i32
    %c0_i32_0 = arith.constant 0 : i32
    return %arg0, %c0_i32 : i32, i32
  }
}

</mosaic_0001>

<llo_original>
// kernel: tpu_custom_call.1
$region0: #{tpu_custom_call.1}
  #allocation0 [shape = 'u32[]', space=smem, size = 0x4, offset = 0x4, fixed_abs, tag = 'smem constant byte address 0x4 - core index']
  #allocation1 [shape = 'u32[144,128]{1,0:T(1,128)}', space=vmem, size = 0x12000, scoped, tag = 'internal scratch']
  %s0 = inlined_call_operand.hbm [shape: f32[2,1024], index: 0, kind: input, shape index: {}]
  %s1 = inlined_call_operand.hbm [shape: bf16[1024,256], index: 1, kind: input, shape index: {}]
  %s2 = inlined_call_operand.vmem [shape: f32[1,256], index: 2, kind: input, shape index: {}]
  %s3 = inlined_call_operand.hbm [shape: bf16[256,128], index: 3, kind: input, shape index: {}]
  %s4 = inlined_call_operand.vmem [shape: f32[1,128], index: 4, kind: input, shape index: {}]
  %s5 = inlined_call_operand.hbm [shape: bf16[2,128], index: 5, kind: output, shape index: {}]
  %s6 = sld [smem:[#allocation0]]
  $region42: #{tpu_custom_call.1} parent=0
    _
  %s8 = ssub.s32 1, %s6
  %s9 = scalar_select 0, %s8, %s6
  $region1: #{tpu_custom_call.1} parent=0
    #allocation2 [shape = 'u8[32768]{0}', space=vmem, size = 0x8000, scoped, tag = 'input window, operand 0, single buffered']
    #allocation3 [shape = 's32[1]{0}', space=sflag, size = 0x4, scoped, tag = 'scoped memory for tpu_custom_call.1']
    #allocation4 [shape = 's32[1]{0}', space=sflag, size = 0x4, scoped, tag = 'scoped memory for tpu_custom_call.1']
    #allocation5 [shape = 'u8[524288]{0}', space=vmem, size = 0x80000, scoped, tag = 'input window, operand 1, single buffered']
    #allocation6 [shape = 's32[1]{0}', space=sflag, size = 0x4, scoped, tag = 'scoped memory for tpu_custom_call.1']
    #allocation7 [shape = 'u8[65536]{0}', space=vmem, size = 0x10000, scoped, tag = 'input window, operand 3, single buffered']
    #allocation8 [shape = 'u8[2048]{0}', space=vmem, size = 0x800, scoped, tag = 'output window, operand 0, single buffered']
    %10 = vsyncpa [#allocation3], 0
    %11 = vsyncpa [#allocation6], 0
    %12 = vsyncpa [#allocation4], 0
    // Predicated region
    $region2: #{tpu_custom_call.1} parent=1 // pred_check
      _
    $region3: #{tpu_custom_call.1} parent=1 // pred_check_branch
      %14 = sbr.rel (0) target = $region5
    $region4: #{tpu_custom_call.1} parent=1 // pred_region
      %s16 = ssub.s32 1024, 256
      %17 = vsyncadd [#allocation3], %s16
      %s18 = sshll.u32 [#allocation2], 4
      %s19 = int_to_ptr.vmem [resolvable:$true] %s18
      %24 = dma.hbm_to_vmem [thread:$0]  %s0, 256, %s19, [#allocation3], 256, 256, 16
    $region5: #{tpu_custom_call.1} parent=1 // pred_fallthru
      _
    // Predicated region
    $region6: #{tpu_custom_call.1} parent=1 // pred_check
      _
    $region7: #{tpu_custom_call.1} parent=1 // pred_check_branch
      %26 = sbr.rel (0) target = $region9
    $region8: #{tpu_custom_call.1} parent=1 // pred_region
      %s28 = ssub.s32 16384, 16384
      %29 = vsyncadd [#allocation6], %s28
      %s30 = sshll.u32 [#allocation5], 4
      %s31 = int_to_ptr.vmem [resolvable:$true] %s30
      %36 = dma.hbm_to_vmem [thread:$0]  %s1, 16384, %s31, [#allocation6], 128, 128, 8
    $region9: #{tpu_custom_call.1} parent=1 // pred_fallthru
      _
    // Predicated region
    $region10: #{tpu_custom_call.1} parent=1 // pred_check
      _
    $region11: #{tpu_custom_call.1} parent=1 // pred_check_branch
      %38 = sbr.rel (0) target = $region13
    $region12: #{tpu_custom_call.1} parent=1 // pred_region
      _
    $region13: #{tpu_custom_call.1} parent=1 // pred_fallthru
      _
    // Predicated region
    $region14: #{tpu_custom_call.1} parent=1 // pred_check
      _
    $region15: #{tpu_custom_call.1} parent=1 // pred_check_branch
      %40 = sbr.rel (0) target = $region17
    $region16: #{tpu_custom_call.1} parent=1 // pred_region
      %s42 = ssub.s32 2048, 2048
      %43 = vsyncadd [#allocation6], %s42
      %s44 = sshll.u32 [#allocation7], 4
      %s45 = int_to_ptr.vmem [resolvable:$true] %s44
      %50 = dma.hbm_to_vmem [thread:$0]  %s3, 2048, %s45, [#allocation6], 64, 64, 4
    $region17: #{tpu_custom_call.1} parent=1 // pred_fallthru
      _
    // Predicated region
    $region18: #{tpu_custom_call.1} parent=1 // pred_check
      _
    $region19: #{tpu_custom_call.1} parent=1 // pred_check_branch
      %52 = sbr.rel (0) target = $region21
    $region20: #{tpu_custom_call.1} parent=1 // pred_region
      _
    $region21: #{tpu_custom_call.1} parent=1 // pred_fallthru
      _
    // Predicated region
    $region22: #{tpu_custom_call.1} parent=1 // pred_check
      _
    $region23: #{tpu_custom_call.1} parent=1 // pred_check_branch
      %54 = sbr.rel (0) target = $region25
    $region24: #{tpu_custom_call.1} parent=1 // pred_region
      %55 = dma.done [#allocation3], 1024
    $region25: #{tpu_custom_call.1} parent=1 // pred_fallthru
      _
    // Predicated region
    $region26: #{tpu_custom_call.1} parent=1 // pred_check
      _
    $region27: #{tpu_custom_call.1} parent=1 // pred_check_branch
      %57 = sbr.rel (0) target = $region29
    $region28: #{tpu_custom_call.1} parent=1 // pred_region
      %58 = dma.done [#allocation6], 16384
    $region29: #{tpu_custom_call.1} parent=1 // pred_fallthru
      _
    // Predicated region
    $region30: #{tpu_custom_call.1} parent=1 // pred_check
      _
    $region31: #{tpu_custom_call.1} parent=1 // pred_check_branch
      %60 = sbr.rel (0) target = $region33
    $region32: #{tpu_custom_call.1} parent=1 // pred_region
      %61 = dma.done [#allocation6], 2048
    $region33: #{tpu_custom_call.1} parent=1 // pred_fallthru
      _
    %v63 = vld [vmem:[#allocation2] sm:$0xff]
    %v64 = vld [vmem:[#allocation2 + $0x8] sm:$0xff]
    %v65 = vld [vmem:[#allocation2 + $0x10] sm:$0xff]
    %v66 = vld [vmem:[#allocation2 + $0x18] sm:$0xff]
    %v67 = vld [vmem:[#allocation2 + $0x20] sm:$0xff]
    %v68 = vld [vmem:[#allocation2 + $0x28] sm:$0xff]
    %v69 = vld [vmem:[#allocation2 + $0x30] sm:$0xff]
    %v70 = vld [vmem:[#allocation2 + $0x38] sm:$0xff]
    %v79 = vcombine.low %v63, %v65
    %v80 = vcombine.high %v63, %v65
    %v81 = vcombine.low %v67, %v69
    %v82 = vcombine.high %v67, %v69
    %v84 = vunpack.c.l.s4 1983009808
    %v85 = vunpack.c.0.s8 %v84
    %v86 = vlaneseq
    %v87 = vshrl.u32 %v86, 7
    %v88 = vsub.s32 %v85, %v87
    %v89 = vrot.slane %v79, %v88
    %v91 = vunpack.c.l.s4 1983009808
    %v92 = vunpack.c.0.s8 %v91
    %v93 = vlaneseq
    %v94 = vshrl.u32 %v93, 7
    %v95 = vsub.s32 %v92, %v94
    %v96 = vrot.slane %v80, %v95
    %v98 = vunpack.c.l.s4 1983009808
    %v99 = vunpack.c.0.s8 %v98
    %v100 = vlaneseq
    %v101 = vshrl.u32 %v100, 7
    %v102 = vsub.s32 %v99, %v101
    %v103 = vrot.slane %v81, %v102
    %v105 = vunpack.c.l.s4 1983009808
    %v106 = vunpack.c.0.s8 %v105
    %v107 = vlaneseq
    %v108 = vshrl.u32 %v107, 7
    %v109 = vsub.s32 %v106, %v108
    %v110 = vrot.slane %v82, %v109
    %v111 = vcombine.low %v89, %v103
    %v112 = vcombine.high %v89, %v103
    %v113 = vcombine.low %v96, %v110
    %v114 = vcombine.high %v96, %v110
    %v115 = vcombine.low %v64, %v66
    %v116 = vcombine.high %v64, %v66
    %v117 = vcombine.low %v68, %v70
    %v118 = vcombine.high %v68, %v70
    %v120 = vunpack.c.l.s4 1983009808
    %v121 = vunpack.c.0.s8 %v120
    %v122 = vlaneseq
    %v123 = vshrl.u32 %v122, 7
    %v124 = vsub.s32 %v121, %v123
    %v125 = vrot.slane %v115, %v124
    %v127 = vunpack.c.l.s4 1983009808
    %v128 = vunpack.c.0.s8 %v127
    %v129 = vlaneseq
    %v130 = vshrl.u32 %v129, 7
    %v131 = vsub.s32 %v128, %v130
    %v132 = vrot.slane %v116, %v131
    %v134 = vunpack.c.l.s4 1983009808
    %v135 = vunpack.c.0.s8 %v134
    %v136 = vlaneseq
    %v137 = vshrl.u32 %v136, 7
    %v138 = vsub.s32 %v135, %v137
    %v139 = vrot.slane %v117, %v138
    %v141 = vunpack.c.l.s4 1983009808
    %v142 = vunpack.c.0.s8 %v141
    %v143 = vlaneseq
    %v144 = vshrl.u32 %v143, 7
    %v145 = vsub.s32 %v142, %v144
    %v146 = vrot.slane %v118, %v145
    %v147 = vcombine.low %v125, %v139
    %v148 = vcombine.high %v125, %v139
    %v149 = vcombine.low %v132, %v146
    %v150 = vcombine.high %v132, %v146
    %v159 = vpack.c.bf16 %v111, %v111
    %v160 = vpack.c.bf16 %v112, %v112
    %v161 = vpack.c.bf16 %v113, %v113
    %v162 = vpack.c.bf16 %v114, %v114
    %v163 = vpack.c.bf16 %v147, %v147
    %v164 = vpack.c.bf16 %v148, %v148
    %v165 = vpack.c.bf16 %v149, %v149
    %v166 = vpack.c.bf16 %v150, %v150
    %v167 = vld [vmem:[#allocation5] sm:$0xff]
    %v168 = vld [vmem:[#allocation5 + $0x8] sm:$0xff]
    %v169 = vld [vmem:[#allocation5 + $0x10] sm:$0xff]
    %v170 = vld [vmem:[#allocation5 + $0x18] sm:$0xff]
    %v171 = vld [vmem:[#allocation5 + $0x20] sm:$0xff]
    %v172 = vld [vmem:[#allocation5 + $0x28] sm:$0xff]
    %v173 = vld [vmem:[#allocation5 + $0x30] sm:$0xff]
    %v174 = vld [vmem:[#allocation5 + $0x38] sm:$0xff]
    %v175 = vld [vmem:[#allocation5 + $0x40] sm:$0xff]
    %v176 = vld [vmem:[#allocation5 + $0x48] sm:$0xff]
    %v177 = vld [vmem:[#allocation5 + $0x50] sm:$0xff]
    %v178 = vld [vmem:[#allocation5 + $0x58] sm:$0xff]
    %v179 = vld [vmem:[#allocation5 + $0x60] sm:$0xff]
    %v180 = vld [vmem:[#allocation5 + $0x68] sm:$0xff]
    %v181 = vld [vmem:[#allocation5 + $0x70] sm:$0xff]
    %v182 = vld [vmem:[#allocation5 + $0x78] sm:$0xff]
    %v183 = vld [vmem:[#allocation5 + $0x80] sm:$0xff]
    %v184 = vld [vmem:[#allocation5 + $0x88] sm:$0xff]
    %v185 = vld [vmem:[#allocation5 + $0x90] sm:$0xff]
    %v186 = vld [vmem:[#allocation5 + $0x98] sm:$0xff]
    %v187 = vld [vmem:[#allocation5 + $0xa0] sm:$0xff]
    %v188 = vld [vmem:[#allocation5 + $0xa8] sm:$0xff]
    %v189 = vld [vmem:[#allocation5 + $0xb0] sm:$0xff]
    %v190 = vld [vmem:[#allocation5 + $0xb8] sm:$0xff]
    %v191 = vld [vmem:[#allocation5 + $0xc0] sm:$0xff]
    %v192 = vld [vmem:[#allocation5 + $0xc8] sm:$0xff]
    %v193 = vld [vmem:[#allocation5 + $0xd0] sm:$0xff]
    %v194 = vld [vmem:[#allocation5 + $0xd8] sm:$0xff]
    %v195 = vld [vmem:[#allocation5 + $0xe0] sm:$0xff]
    %v196 = vld [vmem:[#allocation5 + $0xe8] sm:$0xff]
    %v197 = vld [vmem:[#allocation5 + $0xf0] sm:$0xff]
    %v198 = vld [vmem:[#allocation5 + $0xf8] sm:$0xff]
    %v199 = vld [vmem:[#allocation5 + $0x100] sm:$0xff]
    %v200 = vld [vmem:[#allocation5 + $0x108] sm:$0xff]
    %v201 = vld [vmem:[#allocation5 + $0x110] sm:$0xff]
    %v202 = vld [vmem:[#allocation5 + $0x118] sm:$0xff]
    %v203 = vld [vmem:[#allocation5 + $0x120] sm:$0xff]
    %v204 = vld [vmem:[#allocation5 + $0x128] sm:$0xff]
    %v205 = vld [vmem:[#allocation5 + $0x130] sm:$0xff]
    %v206 = vld [vmem:[#allocation5 + $0x138] sm:$0xff]
    %v207 = vld [vmem:[#allocation5 + $0x140] sm:$0xff]
    %v208 = vld [vmem:[#allocation5 + $0x148] sm:$0xff]
    %v209 = vld [vmem:[#allocation5 + $0x150] sm:$0xff]
    %v210 = vld [vmem:[#allocation5 + $0x158] sm:$0xff]
    %v211 = vld [vmem:[#allocation5 + $0x160] sm:$0xff]
    %v212 = vld [vmem:[#allocation5 + $0x168] sm:$0xff]
    %v213 = vld [vmem:[#allocation5 + $0x170] sm:$0xff]
    %v214 = vld [vmem:[#allocation5 + $0x178] sm:$0xff]
    %v215 = vld [vmem:[#allocation5 + $0x180] sm:$0xff]
    %v216 = vld [vmem:[#allocation5 + $0x188] sm:$0xff]
    %v217 = vld [vmem:[#allocation5 + $0x190] sm:$0xff]
    %v218 = vld [vmem:[#allocation5 + $0x198] sm:$0xff]
    %v219 = vld [vmem:[#allocation5 + $0x1a0] sm:$0xff]
    %v220 = vld [vmem:[#allocation5 + $0x1a8] sm:$0xff]
    %v221 = vld [vmem:[#allocation5 + $0x1b0] sm:$0xff]
    %v222 = vld [vmem:[#allocation5 + $0x1b8] sm:$0xff]
    %v223 = vld [vmem:[#allocation5 + $0x1c0] sm:$0xff]
    %v224 = vld [vmem:[#allocation5 + $0x1c8] sm:$0xff]
    %v225 = vld [vmem:[#allocation5 + $0x1d0] sm:$0xff]
    %v226 = vld [vmem:[#allocation5 + $0x1d8] sm:$0xff]
    %v227 = vld [vmem:[#allocation5 + $0x1e0] sm:$0xff]
    %v228 = vld [vmem:[#allocation5 + $0x1e8] sm:$0xff]
    %v229 = vld [vmem:[#allocation5 + $0x1f0] sm:$0xff]
    %v230 = vld [vmem:[#allocation5 + $0x1f8] sm:$0xff]
    %v231 = vld [vmem:[#allocation5 + $0x200] sm:$0xff]
    %v232 = vld [vmem:[#allocation5 + $0x208] sm:$0xff]
    %v233 = vld [vmem:[#allocation5 + $0x210] sm:$0xff]
    %v234 = vld [vmem:[#allocation5 + $0x218] sm:$0xff]
    %v235 = vld [vmem:[#allocation5 + $0x220] sm:$0xff]
    %v236 = vld [vmem:[#allocation5 + $0x228] sm:$0xff]
    %v237 = vld [vmem:[#allocation5 + $0x230] sm:$0xff]
    %v238 = vld [vmem:[#allocation5 + $0x238] sm:$0xff]
    %v239 = vld [vmem:[#allocation5 + $0x240] sm:$0xff]
    %v240 = vld [vmem:[#allocation5 + $0x248] sm:$0xff]
    %v241 = vld [vmem:[#allocation5 + $0x250] sm:$0xff]
    %v242 = vld [vmem:[#allocation5 + $0x258] sm:$0xff]
    %v243 = vld [vmem:[#allocation5 + $0x260] sm:$0xff]
    %v244 = vld [vmem:[#allocation5 + $0x268] sm:$0xff]
    %v245 = vld [vmem:[#allocation5 + $0x270] sm:$0xff]
    %v246 = vld [vmem:[#allocation5 + $0x278] sm:$0xff]
    %v247 = vld [vmem:[#allocation5 + $0x280] sm:$0xff]
    %v248 = vld [vmem:[#allocation5 + $0x288] sm:$0xff]
    %v249 = vld [vmem:[#allocation5 + $0x290] sm:$0xff]
    %v250 = vld [vmem:[#allocation5 + $0x298] sm:$0xff]
    %v251 = vld [vmem:[#allocation5 + $0x2a0] sm:$0xff]
    %v252 = vld [vmem:[#allocation5 + $0x2a8] sm:$0xff]
    %v253 = vld [vmem:[#allocation5 + $0x2b0] sm:$0xff]
    %v254 = vld [vmem:[#allocation5 + $0x2b8] sm:$0xff]
    %v255 = vld [vmem:[#allocation5 + $0x2c0] sm:$0xff]
    %v256 = vld [vmem:[#allocation5 + $0x2c8] sm:$0xff]
    %v257 = vld [vmem:[#allocation5 + $0x2d0] sm:$0xff]
    %v258 = vld [vmem:[#allocation5 + $0x2d8] sm:$0xff]
    %v259 = vld [vmem:[#allocation5 + $0x2e0] sm:$0xff]
    %v260 = vld [vmem:[#allocation5 + $0x2e8] sm:$0xff]
    %v261 = vld [vmem:[#allocation5 + $0x2f0] sm:$0xff]
    %v262 = vld [vmem:[#allocation5 + $0x2f8] sm:$0xff]
    %v263 = vld [vmem:[#allocation5 + $0x300] sm:$0xff]
    %v264 = vld [vmem:[#allocation5 + $0x308] sm:$0xff]
    %v265 = vld [vmem:[#allocation5 + $0x310] sm:$0xff]
    %v266 = vld [vmem:[#allocation5 + $0x318] sm:$0xff]
    %v267 = vld [vmem:[#allocation5 + $0x320] sm:$0xff]
    %v268 = vld [vmem:[#allocation5 + $0x328] sm:$0xff]
    %v269 = vld [vmem:[#allocation5 + $0x330] sm:$0xff]
    %v270 = vld [vmem:[#allocation5 + $0x338] sm:$0xff]
    %v271 = vld [vmem:[#allocation5 + $0x340] sm:$0xff]
    %v272 = vld [vmem:[#allocation5 + $0x348] sm:$0xff]
    %v273 = vld [vmem:[#allocation5 + $0x350] sm:$0xff]
    %v274 = vld [vmem:[#allocation5 + $0x358] sm:$0xff]
    %v275 = vld [vmem:[#allocation5 + $0x360] sm:$0xff]
    %v276 = vld [vmem:[#allocation5 + $0x368] sm:$0xff]
    %v277 = vld [vmem:[#allocation5 + $0x370] sm:$0xff]
    %v278 = vld [vmem:[#allocation5 + $0x378] sm:$0xff]
    %v279 = vld [vmem:[#allocation5 + $0x380] sm:$0xff]
    %v280 = vld [vmem:[#allocation5 + $0x388] sm:$0xff]
    %v281 = vld [vmem:[#allocation5 + $0x390] sm:$0xff]
    %v282 = vld [vmem:[#allocation5 + $0x398] sm:$0xff]
    %v283 = vld [vmem:[#allocation5 + $0x3a0] sm:$0xff]
    %v284 = vld [vmem:[#allocation5 + $0x3a8] sm:$0xff]
    %v285 = vld [vmem:[#allocation5 + $0x3b0] sm:$0xff]
    %v286 = vld [vmem:[#allocation5 + $0x3b8] sm:$0xff]
    %v287 = vld [vmem:[#allocation5 + $0x3c0] sm:$0xff]
    %v288 = vld [vmem:[#allocation5 + $0x3c8] sm:$0xff]
    %v289 = vld [vmem:[#allocation5 + $0x3d0] sm:$0xff]
    %v290 = vld [vmem:[#allocation5 + $0x3d8] sm:$0xff]
    %v291 = vld [vmem:[#allocation5 + $0x3e0] sm:$0xff]
    %v292 = vld [vmem:[#allocation5 + $0x3e8] sm:$0xff]
    %v293 = vld [vmem:[#allocation5 + $0x3f0] sm:$0xff]
    %v294 = vld [vmem:[#allocation5 + $0x3f8] sm:$0xff]
    %v295 = vld [vmem:[%s2] sm:$0x3]
    %v297 = vlaneseq
    %v298 = vshrl.u32 %v297, 7
    %v299 = vsub.s32 0, %v298
    %v300 = vrot.slane %v295, %v299
    %v301 = vlaneseq
    %v302 = vshrl.u32 %v301, 7
    %v303 = vsub.s32 1, %v302
    %v304 = vrot.slane %v295, %v303
    %v435 = vunpack.c.l.b16 %v167
    %v436 = vunpack.c.h.b16 %v167
    %v437 = vunpack.c.l.b16 %v168
    %v438 = vunpack.c.h.b16 %v168
    %v439 = vunpack.c.l.b16 %v169
    %v440 = vunpack.c.h.b16 %v169
    %v441 = vunpack.c.l.b16 %v170
    %v442 = vunpack.c.h.b16 %v170
    %v443 = vunpack.c.l.b16 %v171
    %v444 = vunpack.c.h.b16 %v171
    %v445 = vunpack.c.l.b16 %v172
    %v446 = vunpack.c.h.b16 %v172
    %v447 = vunpack.c.l.b16 %v173
    %v448 = vunpack.c.h.b16 %v173
    %v449 = vunpack.c.l.b16 %v174
    %v450 = vunpack.c.h.b16 %v174
    %v451 = vunpack.c.l.b16 %v175
    %v452 = vunpack.c.h.b16 %v175
    %v453 = vunpack.c.l.b16 %v176
    %v454 = vunpack.c.h.b16 %v176
    %v455 = vunpack.c.l.b16 %v177
    %v456 = vunpack.c.h.b16 %v177
    %v457 = vunpack.c.l.b16 %v178
    %v458 = vunpack.c.h.b16 %v178
    %v459 = vunpack.c.l.b16 %v179
    %v460 = vunpack.c.h.b16 %v179
    %v461 = vunpack.c.l.b16 %v180
    %v462 = vunpack.c.h.b16 %v180
    %v463 = vunpack.c.l.b16 %v181
    %v464 = vunpack.c.h.b16 %v181
    %v465 = vunpack.c.l.b16 %v182
    %v466 = vunpack.c.h.b16 %v182
    %v467 = vunpack.c.l.b16 %v183
    %v468 = vunpack.c.h.b16 %v183
    %v469 = vunpack.c.l.b16 %v184
    %v470 = vunpack.c.h.b16 %v184
    %v471 = vunpack.c.l.b16 %v185
    %v472 = vunpack.c.h.b16 %v185
    %v473 = vunpack.c.l.b16 %v186
    %v474 = vunpack.c.h.b16 %v186
    %v475 = vunpack.c.l.b16 %v187
    %v476 = vunpack.c.h.b16 %v187
    %v477 = vunpack.c.l.b16 %v188
    %v478 = vunpack.c.h.b16 %v188
    %v479 = vunpack.c.l.b16 %v189
    %v480 = vunpack.c.h.b16 %v189
    %v481 = vunpack.c.l.b16 %v190
    %v482 = vunpack.c.h.b16 %v190
    %v483 = vunpack.c.l.b16 %v191
    %v484 = vunpack.c.h.b16 %v191
    %v485 = vunpack.c.l.b16 %v192
    %v486 = vunpack.c.h.b16 %v192
    %v487 = vunpack.c.l.b16 %v193
    %v488 = vunpack.c.h.b16 %v193
    %v489 = vunpack.c.l.b16 %v194
    %v490 = vunpack.c.h.b16 %v194
    %v491 = vunpack.c.l.b16 %v195
    %v492 = vunpack.c.h.b16 %v195
    %v493 = vunpack.c.l.b16 %v196
    %v494 = vunpack.c.h.b16 %v196
    %v495 = vunpack.c.l.b16 %v197
    %v496 = vunpack.c.h.b16 %v197
    %v497 = vunpack.c.l.b16 %v198
    %v498 = vunpack.c.h.b16 %v198
    %v499 = vunpack.c.l.b16 %v199
    %v500 = vunpack.c.h.b16 %v199
    %v501 = vunpack.c.l.b16 %v200
    %v502 = vunpack.c.h.b16 %v200
    %v503 = vunpack.c.l.b16 %v201
    %v504 = vunpack.c.h.b16 %v201
    %v505 = vunpack.c.l.b16 %v202
    %v506 = vunpack.c.h.b16 %v202
    %v507 = vunpack.c.l.b16 %v203
    %v508 = vunpack.c.h.b16 %v203
    %v509 = vunpack.c.l.b16 %v204
    %v510 = vunpack.c.h.b16 %v204
    %v511 = vunpack.c.l.b16 %v205
    %v512 = vunpack.c.h.b16 %v205
    %v513 = vunpack.c.l.b16 %v206
    %v514 = vunpack.c.h.b16 %v206
    %v515 = vunpack.c.l.b16 %v207
    %v516 = vunpack.c.h.b16 %v207
    %v517 = vunpack.c.l.b16 %v208
    %v518 = vunpack.c.h.b16 %v208
    %v519 = vunpack.c.l.b16 %v209
    %v520 = vunpack.c.h.b16 %v209
    %v521 = vunpack.c.l.b16 %v210
    %v522 = vunpack.c.h.b16 %v210
    %v523 = vunpack.c.l.b16 %v211
    %v524 = vunpack.c.h.b16 %v211
    %v525 = vunpack.c.l.b16 %v212
    %v526 = vunpack.c.h.b16 %v212
    %v527 = vunpack.c.l.b16 %v213
    %v528 = vunpack.c.h.b16 %v213
    %v529 = vunpack.c.l.b16 %v214
    %v530 = vunpack.c.h.b16 %v214
    %v531 = vunpack.c.l.b16 %v215
    %v532 = vunpack.c.h.b16 %v215
    %v533 = vunpack.c.l.b16 %v216
    %v534 = vunpack.c.h.b16 %v216
    %v535 = vunpack.c.l.b16 %v217
    %v536 = vunpack.c.h.b16 %v217
    %v537 = vunpack.c.l.b16 %v218
    %v538 = vunpack.c.h.b16 %v218
    %v539 = vunpack.c.l.b16 %v219
    %v540 = vunpack.c.h.b16 %v219
    %v541 = vunpack.c.l.b16 %v220
    %v542 = vunpack.c.h.b16 %v220
    %v543 = vunpack.c.l.b16 %v221
    %v544 = vunpack.c.h.b16 %v221
    %v545 = vunpack.c.l.b16 %v222
    %v546 = vunpack.c.h.b16 %v222
    %v547 = vunpack.c.l.b16 %v223
    %v548 = vunpack.c.h.b16 %v223
    %v549 = vunpack.c.l.b16 %v224
    %v550 = vunpack.c.h.b16 %v224
    %v551 = vunpack.c.l.b16 %v225
    %v552 = vunpack.c.h.b16 %v225
    %v553 = vunpack.c.l.b16 %v226
    %v554 = vunpack.c.h.b16 %v226
    %v555 = vunpack.c.l.b16 %v227
    %v556 = vunpack.c.h.b16 %v227
    %v557 = vunpack.c.l.b16 %v228
    %v558 = vunpack.c.h.b16 %v228
    %v559 = vunpack.c.l.b16 %v229
    %v560 = vunpack.c.h.b16 %v229
    %v561 = vunpack.c.l.b16 %v230
    %v562 = vunpack.c.h.b16 %v230
    %v563 = vunpack.c.l.b16 %v231
    %v564 = vunpack.c.h.b16 %v231
    %v565 = vunpack.c.l.b16 %v232
    %v566 = vunpack.c.h.b16 %v232
    %v567 = vunpack.c.l.b16 %v233
    %v568 = vunpack.c.h.b16 %v233
    %v569 = vunpack.c.l.b16 %v234
    %v570 = vunpack.c.h.b16 %v234
    %v571 = vunpack.c.l.b16 %v235
    %v572 = vunpack.c.h.b16 %v235
    %v573 = vunpack.c.l.b16 %v236
    %v574 = vunpack.c.h.b16 %v236
    %v575 = vunpack.c.l.b16 %v237
    %v576 = vunpack.c.h.b16 %v237
    %v577 = vunpack.c.l.b16 %v238
    %v578 = vunpack.c.h.b16 %v238
    %v579 = vunpack.c.l.b16 %v239
    %v580 = vunpack.c.h.b16 %v239
    %v581 = vunpack.c.l.b16 %v240
    %v582 = vunpack.c.h.b16 %v240
    %v583 = vunpack.c.l.b16 %v241
    %v584 = vunpack.c.h.b16 %v241
    %v585 = vunpack.c.l.b16 %v242
    %v586 = vunpack.c.h.b16 %v242
    %v587 = vunpack.c.l.b16 %v243
    %v588 = vunpack.c.h.b16 %v243
    %v589 = vunpack.c.l.b16 %v244
    %v590 = vunpack.c.h.b16 %v244
    %v591 = vunpack.c.l.b16 %v245
    %v592 = vunpack.c.h.b16 %v245
    %v593 = vunpack.c.l.b16 %v246
    %v594 = vunpack.c.h.b16 %v246
    %v595 = vunpack.c.l.b16 %v247
    %v596 = vunpack.c.h.b16 %v247
    %v597 = vunpack.c.l.b16 %v248
    %v598 = vunpack.c.h.b16 %v248
    %v599 = vunpack.c.l.b16 %v249
    %v600 = vunpack.c.h.b16 %v249
    %v601 = vunpack.c.l.b16 %v250
    %v602 = vunpack.c.h.b16 %v250
    %v603 = vunpack.c.l.b16 %v251
    %v604 = vunpack.c.h.b16 %v251
    %v605 = vunpack.c.l.b16 %v252
    %v606 = vunpack.c.h.b16 %v252
    %v607 = vunpack.c.l.b16 %v253
    %v608 = vunpack.c.h.b16 %v253
    %v609 = vunpack.c.l.b16 %v254
    %v610 = vunpack.c.h.b16 %v254
    %v611 = vunpack.c.l.b16 %v255
    %v612 = vunpack.c.h.b16 %v255
    %v613 = vunpack.c.l.b16 %v256
    %v614 = vunpack.c.h.b16 %v256
    %v615 = vunpack.c.l.b16 %v257
    %v616 = vunpack.c.h.b16 %v257
    %v617 = vunpack.c.l.b16 %v258
    %v618 = vunpack.c.h.b16 %v258
    %v619 = vunpack.c.l.b16 %v259
    %v620 = vunpack.c.h.b16 %v259
    %v621 = vunpack.c.l.b16 %v260
    %v622 = vunpack.c.h.b16 %v260
    %v623 = vunpack.c.l.b16 %v261
    %v624 = vunpack.c.h.b16 %v261
    %v625 = vunpack.c.l.b16 %v262
    %v626 = vunpack.c.h.b16 %v262
    %v627 = vunpack.c.l.b16 %v263
    %v628 = vunpack.c.h.b16 %v263
    %v629 = vunpack.c.l.b16 %v264
    %v630 = vunpack.c.h.b16 %v264
    %v631 = vunpack.c.l.b16 %v265
    %v632 = vunpack.c.h.b16 %v265
    %v633 = vunpack.c.l.b16 %v266
    %v634 = vunpack.c.h.b16 %v266
    %v635 = vunpack.c.l.b16 %v267
    %v636 = vunpack.c.h.b16 %v267
    %v637 = vunpack.c.l.b16 %v268
    %v638 = vunpack.c.h.b16 %v268
    %v639 = vunpack.c.l.b16 %v269
    %v640 = vunpack.c.h.b16 %v269
    %v641 = vunpack.c.l.b16 %v270
    %v642 = vunpack.c.h.b16 %v270
    %v643 = vunpack.c.l.b16 %v271
    %v644 = vunpack.c.h.b16 %v271
    %v645 = vunpack.c.l.b16 %v272
    %v646 = vunpack.c.h.b16 %v272
    %v647 = vunpack.c.l.b16 %v273
    %v648 = vunpack.c.h.b16 %v273
    %v649 = vunpack.c.l.b16 %v274
    %v650 = vunpack.c.h.b16 %v274
    %v651 = vunpack.c.l.b16 %v275
    %v652 = vunpack.c.h.b16 %v275
    %v653 = vunpack.c.l.b16 %v276
    %v654 = vunpack.c.h.b16 %v276
    %v655 = vunpack.c.l.b16 %v277
    %v656 = vunpack.c.h.b16 %v277
    %v657 = vunpack.c.l.b16 %v278
    %v658 = vunpack.c.h.b16 %v278
    %v659 = vunpack.c.l.b16 %v279
    %v660 = vunpack.c.h.b16 %v279
    %v661 = vunpack.c.l.b16 %v280
    %v662 = vunpack.c.h.b16 %v280
    %v663 = vunpack.c.l.b16 %v281
    %v664 = vunpack.c.h.b16 %v281
    %v665 = vunpack.c.l.b16 %v282
    %v666 = vunpack.c.h.b16 %v282
    %v667 = vunpack.c.l.b16 %v283
    %v668 = vunpack.c.h.b16 %v283
    %v669 = vunpack.c.l.b16 %v284
    %v670 = vunpack.c.h.b16 %v284
    %v671 = vunpack.c.l.b16 %v285
    %v672 = vunpack.c.h.b16 %v285
    %v673 = vunpack.c.l.b16 %v286
    %v674 = vunpack.c.h.b16 %v286
    %v675 = vunpack.c.l.b16 %v287
    %v676 = vunpack.c.h.b16 %v287
    %v677 = vunpack.c.l.b16 %v288
    %v678 = vunpack.c.h.b16 %v288
    %v679 = vunpack.c.l.b16 %v289
    %v680 = vunpack.c.h.b16 %v289
    %v681 = vunpack.c.l.b16 %v290
    %v682 = vunpack.c.h.b16 %v290
    %v683 = vunpack.c.l.b16 %v291
    %v684 = vunpack.c.h.b16 %v291
    %v685 = vunpack.c.l.b16 %v292
    %v686 = vunpack.c.h.b16 %v292
    %v687 = vunpack.c.l.b16 %v293
    %v688 = vunpack.c.h.b16 %v293
    %v689 = vunpack.c.l.b16 %v294
    %v690 = vunpack.c.h.b16 %v294
    %v691 = vpack.c.b16 %v437, %v435
    %v692 = vpack.c.b16 %v438, %v436
    %v693 = vpack.c.b16 %v441, %v439
    %v694 = vpack.c.b16 %v442, %v440
    %v695 = vpack.c.b16 %v445, %v443
    %v696 = vpack.c.b16 %v446, %v444
    %v697 = vpack.c.b16 %v449, %v447
    %v698 = vpack.c.b16 %v450, %v448
    %v699 = vpack.c.b16 %v453, %v451
    %v700 = vpack.c.b16 %v454, %v452
    %v701 = vpack.c.b16 %v457, %v455
    %v702 = vpack.c.b16 %v458, %v456
    %v703 = vpack.c.b16 %v461, %v459
    %v704 = vpack.c.b16 %v462, %v460
    %v705 = vpack.c.b16 %v465, %v463
    %v706 = vpack.c.b16 %v466, %v464
    %v707 = vpack.c.b16 %v469, %v467
    %v708 = vpack.c.b16 %v470, %v468
    %v709 = vpack.c.b16 %v473, %v471
    %v710 = vpack.c.b16 %v474, %v472
    %v711 = vpack.c.b16 %v477, %v475
    %v712 = vpack.c.b16 %v478, %v476
    %v713 = vpack.c.b16 %v481, %v479
    %v714 = vpack.c.b16 %v482, %v480
    %v715 = vpack.c.b16 %v485, %v483
    %v716 = vpack.c.b16 %v486, %v484
    %v717 = vpack.c.b16 %v489, %v487
    %v718 = vpack.c.b16 %v490, %v488
    %v719 = vpack.c.b16 %v493, %v491
    %v720 = vpack.c.b16 %v494, %v492
    %v721 = vpack.c.b16 %v497, %v495
    %v722 = vpack.c.b16 %v498, %v496
    %v723 = vpack.c.b16 %v501, %v499
    %v724 = vpack.c.b16 %v502, %v500
    %v725 = vpack.c.b16 %v505, %v503
    %v726 = vpack.c.b16 %v506, %v504
    %v727 = vpack.c.b16 %v509, %v507
    %v728 = vpack.c.b16 %v510, %v508
    %v729 = vpack.c.b16 %v513, %v511
    %v730 = vpack.c.b16 %v514, %v512
    %v731 = vpack.c.b16 %v517, %v515
    %v732 = vpack.c.b16 %v518, %v516
    %v733 = vpack.c.b16 %v521, %v519
    %v734 = vpack.c.b16 %v522, %v520
    %v735 = vpack.c.b16 %v525, %v523
    %v736 = vpack.c.b16 %v526, %v524
    %v737 = vpack.c.b16 %v529, %v527
    %v738 = vpack.c.b16 %v530, %v528
    %v739 = vpack.c.b16 %v533, %v531
    %v740 = vpack.c.b16 %v534, %v532
    %v741 = vpack.c.b16 %v537, %v535
    %v742 = vpack.c.b16 %v538, %v536
    %v743 = vpack.c.b16 %v541, %v539
    %v744 = vpack.c.b16 %v542, %v540
    %v745 = vpack.c.b16 %v545, %v543
    %v746 = vpack.c.b16 %v546, %v544
    %v747 = vpack.c.b16 %v549, %v547
    %v748 = vpack.c.b16 %v550, %v548
    %v749 = vpack.c.b16 %v553, %v551
    %v750 = vpack.c.b16 %v554, %v552
    %v751 = vpack.c.b16 %v557, %v555
    %v752 = vpack.c.b16 %v558, %v556
    %v753 = vpack.c.b16 %v561, %v559
    %v754 = vpack.c.b16 %v562, %v560
    %v755 = vpack.c.b16 %v565, %v563
    %v756 = vpack.c.b16 %v566, %v564
    %v757 = vpack.c.b16 %v569, %v567
    %v758 = vpack.c.b16 %v570, %v568
    %v759 = vpack.c.b16 %v573, %v571
    %v760 = vpack.c.b16 %v574, %v572
    %v761 = vpack.c.b16 %v577, %v575
    %v762 = vpack.c.b16 %v578, %v576
    %v763 = vpack.c.b16 %v581, %v579
    %v764 = vpack.c.b16 %v582, %v580
    %v765 = vpack.c.b16 %v585, %v583
    %v766 = vpack.c.b16 %v586, %v584
    %v767 = vpack.c.b16 %v589, %v587
    %v768 = vpack.c.b16 %v590, %v588
    %v769 = vpack.c.b16 %v593, %v591
    %v770 = vpack.c.b16 %v594, %v592
    %v771 = vpack.c.b16 %v597, %v595
    %v772 = vpack.c.b16 %v598, %v596
    %v773 = vpack.c.b16 %v601, %v599
    %v774 = vpack.c.b16 %v602, %v600
    %v775 = vpack.c.b16 %v605, %v603
    %v776 = vpack.c.b16 %v606, %v604
    %v777 = vpack.c.b16 %v609, %v607
    %v778 = vpack.c.b16 %v610, %v608
    %v779 = vpack.c.b16 %v613, %v611
    %v780 = vpack.c.b16 %v614, %v612
    %v781 = vpack.c.b16 %v617, %v615
    %v782 = vpack.c.b16 %v618, %v616
    %v783 = vpack.c.b16 %v621, %v619
    %v784 = vpack.c.b16 %v622, %v620
    %v785 = vpack.c.b16 %v625, %v623
    %v786 = vpack.c.b16 %v626, %v624
    %v787 = vpack.c.b16 %v629, %v627
    %v788 = vpack.c.b16 %v630, %v628
    %v789 = vpack.c.b16 %v633, %v631
    %v790 = vpack.c.b16 %v634, %v632
    %v791 = vpack.c.b16 %v637, %v635
    %v792 = vpack.c.b16 %v638, %v636
    %v793 = vpack.c.b16 %v641, %v639
    %v794 = vpack.c.b16 %v642, %v640
    %v795 = vpack.c.b16 %v645, %v643
    %v796 = vpack.c.b16 %v646, %v644
    %v797 = vpack.c.b16 %v649, %v647
    %v798 = vpack.c.b16 %v650, %v648
    %v799 = vpack.c.b16 %v653, %v651
    %v800 = vpack.c.b16 %v654, %v652
    %v801 = vpack.c.b16 %v657, %v655
    %v802 = vpack.c.b16 %v658, %v656
    %v803 = vpack.c.b16 %v661, %v659
    %v804 = vpack.c.b16 %v662, %v660
    %v805 = vpack.c.b16 %v665, %v663
    %v806 = vpack.c.b16 %v666, %v664
    %v807 = vpack.c.b16 %v669, %v667
    %v808 = vpack.c.b16 %v670, %v668
    %v809 = vpack.c.b16 %v673, %v671
    %v810 = vpack.c.b16 %v674, %v672
    %v811 = vpack.c.b16 %v677, %v675
    %v812 = vpack.c.b16 %v678, %v676
    %v813 = vpack.c.b16 %v681, %v679
    %v814 = vpack.c.b16 %v682, %v680
    %v815 = vpack.c.b16 %v685, %v683
    %v816 = vpack.c.b16 %v686, %v684
    %v817 = vpack.c.b16 %v689, %v687
    %v818 = vpack.c.b16 %v690, %v688
    %947 = vmatprep.subr.bf16.mxu0 %v692
    %948 = vmatpush1.bf16.msra.mxu0 %v691
    %949 = vmatprep.subr.bf16.mxu0 %v694
    %950 = vmatpush1.bf16.msra.mxu0 %v693
    %951 = vmatprep.subr.bf16.mxu0 %v696
    %952 = vmatpush1.bf16.msra.mxu0 %v695
    %953 = vmatprep.subr.bf16.mxu0 %v698
    %954 = vmatpush1.bf16.msra.mxu0 %v697
    %955 = vmatprep.subr.bf16.mxu0 %v700
    %956 = vmatpush1.bf16.msra.mxu0 %v699
    %957 = vmatprep.subr.bf16.mxu0 %v702
    %958 = vmatpush1.bf16.msra.mxu0 %v701
    %959 = vmatprep.subr.bf16.mxu0 %v704
    %960 = vmatpush1.bf16.msra.mxu0 %v703
    %961 = vmatprep.subr.bf16.mxu0 %v706
    %962 = vmatpush1.bf16.msra.mxu0 %v705
    %963 = vmatprep.subr.bf16.mxu0 %v708
    %964 = vmatpush1.bf16.msra.mxu0 %v707
    %965 = vmatprep.subr.bf16.mxu0 %v710
    %966 = vmatpush1.bf16.msra.mxu0 %v709
    %967 = vmatprep.subr.bf16.mxu0 %v712
    %968 = vmatpush1.bf16.msra.mxu0 %v711
    %969 = vmatprep.subr.bf16.mxu0 %v714
    %970 = vmatpush1.bf16.msra.mxu0 %v713
    %971 = vmatprep.subr.bf16.mxu0 %v716
    %972 = vmatpush1.bf16.msra.mxu0 %v715
    %973 = vmatprep.subr.bf16.mxu0 %v718
    %974 = vmatpush1.bf16.msra.mxu0 %v717
    %975 = vmatprep.subr.bf16.mxu0 %v720
    %976 = vmatpush1.bf16.msra.mxu0 %v719
    %977 = vmatprep.subr.bf16.mxu0 %v722
    %978 = vmatpush1.bf16.msra.mxu0 %v721
    %979 = vmatprep.mubr.bf16.mxu0 %v160
    %980 = vmatmul.mubr.bf16.gmra.mrb[0].mxu0 %v159
    %v981 = vpop.f32.mrb[0].mxu0
    %v982 = vadd.f32 %v300, %v981
    %v983 = vpop.f32.mrb[0].mxu0
    %v984 = vadd.f32 %v304, %v983
    %v985 = vpop.f32.mrb[0].mxu0
    %v986 = vpop.f32.mrb[0].mxu0
    %987 = vdwg.mxu0
    %988 = vmatprep.subr.bf16.mxu0 %v724
    %989 = vmatpush1.bf16.msra.mxu0 %v723
    %990 = vmatprep.subr.bf16.mxu0 %v726
    %991 = vmatpush1.bf16.msra.mxu0 %v725
    %992 = vmatprep.subr.bf16.mxu0 %v728
    %993 = vmatpush1.bf16.msra.mxu0 %v727
    %994 = vmatprep.subr.bf16.mxu0 %v730
    %995 = vmatpush1.bf16.msra.mxu0 %v729
    %996 = vmatprep.subr.bf16.mxu0 %v732
    %997 = vmatpush1.bf16.msra.mxu0 %v731
    %998 = vmatprep.subr.bf16.mxu0 %v734
    %999 = vmatpush1.bf16.msra.mxu0 %v733
    %1000 = vmatprep.subr.bf16.mxu0 %v736
    %1001 = vmatpush1.bf16.msra.mxu0 %v735
    %1002 = vmatprep.subr.bf16.mxu0 %v738
    %1003 = vmatpush1.bf16.msra.mxu0 %v737
    %1004 = vmatprep.subr.bf16.mxu0 %v740
    %1005 = vmatpush1.bf16.msra.mxu0 %v739
    %1006 = vmatprep.subr.bf16.mxu0 %v742
    %1007 = vmatpush1.bf16.msra.mxu0 %v741
    %1008 = vmatprep.subr.bf16.mxu0 %v744
    %1009 = vmatpush1.bf16.msra.mxu0 %v743
    %1010 = vmatprep.subr.bf16.mxu0 %v746
    %1011 = vmatpush1.bf16.msra.mxu0 %v745
    %1012 = vmatprep.subr.bf16.mxu0 %v748
    %1013 = vmatpush1.bf16.msra.mxu0 %v747
    %1014 = vmatprep.subr.bf16.mxu0 %v750
    %1015 = vmatpush1.bf16.msra.mxu0 %v749
    %1016 = vmatprep.subr.bf16.mxu0 %v752
    %1017 = vmatpush1.bf16.msra.mxu0 %v751
    %1018 = vmatprep.subr.bf16.mxu0 %v754
    %1019 = vmatpush1.bf16.msra.mxu0 %v753
    %1020 = vmatprep.mubr.bf16.mxu0 %v162
    %1021 = vmatmul.mubr.bf16.gmra.mrb[0].mxu0 %v161
    %v1022 = vpop.f32.mrb[0].mxu0
    %v1023 = vadd.f32 %v982, %v1022
    %v1024 = vpop.f32.mrb[0].mxu0
    %v1025 = vadd.f32 %v984, %v1024
    %v1026 = vpop.f32.mrb[0].mxu0
    %v1027 = vpop.f32.mrb[0].mxu0
    %1028 = vdwg.mxu0
    %1029 = vmatprep.subr.bf16.mxu0 %v756
    %1030 = vmatpush1.bf16.msra.mxu0 %v755
    %1031 = vmatprep.subr.bf16.mxu0 %v758
    %1032 = vmatpush1.bf16.msra.mxu0 %v757
    %1033 = vmatprep.subr.bf16.mxu0 %v760
    %1034 = vmatpush1.bf16.msra.mxu0 %v759
    %1035 = vmatprep.subr.bf16.mxu0 %v762
    %1036 = vmatpush1.bf16.msra.mxu0 %v761
    %1037 = vmatprep.subr.bf16.mxu0 %v764
    %1038 = vmatpush1.bf16.msra.mxu0 %v763
    %1039 = vmatprep.subr.bf16.mxu0 %v766
    %1040 = vmatpush1.bf16.msra.mxu0 %v765
    %1041 = vmatprep.subr.bf16.mxu0 %v768
    %1042 = vmatpush1.bf16.msra.mxu0 %v767
    %1043 = vmatprep.subr.bf16.mxu0 %v770
    %1044 = vmatpush1.bf16.msra.mxu0 %v769
    %1045 = vmatprep.subr.bf16.mxu0 %v772
    %1046 = vmatpush1.bf16.msra.mxu0 %v771
    %1047 = vmatprep.subr.bf16.mxu0 %v774
    %1048 = vmatpush1.bf16.msra.mxu0 %v773
    %1049 = vmatprep.subr.bf16.mxu0 %v776
    %1050 = vmatpush1.bf16.msra.mxu0 %v775
    %1051 = vmatprep.subr.bf16.mxu0 %v778
    %1052 = vmatpush1.bf16.msra.mxu0 %v777
    %1053 = vmatprep.subr.bf16.mxu0 %v780
    %1054 = vmatpush1.bf16.msra.mxu0 %v779
    %1055 = vmatprep.subr.bf16.mxu0 %v782
    %1056 = vmatpush1.bf16.msra.mxu0 %v781
    %1057 = vmatprep.subr.bf16.mxu0 %v784
    %1058 = vmatpush1.bf16.msra.mxu0 %v783
    %1059 = vmatprep.subr.bf16.mxu0 %v786
    %1060 = vmatpush1.bf16.msra.mxu0 %v785
    %1061 = vmatprep.mubr.bf16.mxu0 %v164
    %1062 = vmatmul.mubr.bf16.gmra.mrb[0].mxu0 %v163
    %v1063 = vpop.f32.mrb[0].mxu0
    %v1064 = vadd.f32 %v1023, %v1063
    %v1065 = vpop.f32.mrb[0].mxu0
    %v1066 = vadd.f32 %v1025, %v1065
    %v1067 = vpop.f32.mrb[0].mxu0
    %v1068 = vpop.f32.mrb[0].mxu0
    %1069 = vdwg.mxu0
    %1070 = vmatprep.subr.bf16.mxu0 %v788
    %1071 = vmatpush1.bf16.msra.mxu0 %v787
    %1072 = vmatprep.subr.bf16.mxu0 %v790
    %1073 = vmatpush1.bf16.msra.mxu0 %v789
    %1074 = vmatprep.subr.bf16.mxu0 %v792
    %1075 = vmatpush1.bf16.msra.mxu0 %v791
    %1076 = vmatprep.subr.bf16.mxu0 %v794
    %1077 = vmatpush1.bf16.msra.mxu0 %v793
    %1078 = vmatprep.subr.bf16.mxu0 %v796
    %1079 = vmatpush1.bf16.msra.mxu0 %v795
    %1080 = vmatprep.subr.bf16.mxu0 %v798
    %1081 = vmatpush1.bf16.msra.mxu0 %v797
    %1082 = vmatprep.subr.bf16.mxu0 %v800
    %1083 = vmatpush1.bf16.msra.mxu0 %v799
    %1084 = vmatprep.subr.bf16.mxu0 %v802
    %1085 = vmatpush1.bf16.msra.mxu0 %v801
    %1086 = vmatprep.subr.bf16.mxu0 %v804
    %1087 = vmatpush1.bf16.msra.mxu0 %v803
    %1088 = vmatprep.subr.bf16.mxu0 %v806
    %1089 = vmatpush1.bf16.msra.mxu0 %v805
    %1090 = vmatprep.subr.bf16.mxu0 %v808
    %1091 = vmatpush1.bf16.msra.mxu0 %v807
    %1092 = vmatprep.subr.bf16.mxu0 %v810
    %1093 = vmatpush1.bf16.msra.mxu0 %v809
    %1094 = vmatprep.subr.bf16.mxu0 %v812
    %1095 = vmatpush1.bf16.msra.mxu0 %v811
    %1096 = vmatprep.subr.bf16.mxu0 %v814
    %1097 = vmatpush1.bf16.msra.mxu0 %v813
    %1098 = vmatprep.subr.bf16.mxu0 %v816
    %1099 = vmatpush1.bf16.msra.mxu0 %v815
    %1100 = vmatprep.subr.bf16.mxu0 %v818
    %1101 = vmatpush1.bf16.msra.mxu0 %v817
    %1102 = vmatprep.mubr.bf16.mxu0 %v166
    %1103 = vmatmul.mubr.bf16.gmra.mrb[0].mxu0 %v165
    %v1104 = vpop.f32.mrb[0].mxu0
    %v1105 = vadd.f32 %v1064, %v1104
    %v1106 = vpop.f32.mrb[0].mxu0
    %v1107 = vadd.f32 %v1066, %v1106
    %v1108 = vpop.f32.mrb[0].mxu0
    %v1109 = vpop.f32.mrb[0].mxu0
    %1110 = vdwg.mxu0
    %v1111 = vmax.f32 %v1105, 0.0
    %v1112 = vmax.f32 %v1107, 0.0
    %v1113 = vpack.c.bf16 %v1111, %v1111
    %v1114 = vpack.c.bf16 %v1112, %v1112
    %v1115 = vld [vmem:[#allocation7] sm:$0xf]
    %v1116 = vld [vmem:[#allocation7 + $0x4] sm:$0xf]
    %v1117 = vld [vmem:[#allocation7 + $0x8] sm:$0xf]
    %v1118 = vld [vmem:[#allocation7 + $0xc] sm:$0xf]
    %v1119 = vld [vmem:[#allocation7 + $0x10] sm:$0xf]
    %v1120 = vld [vmem:[#allocation7 + $0x14] sm:$0xf]
    %v1121 = vld [vmem:[#allocation7 + $0x18] sm:$0xf]
    %v1122 = vld [vmem:[#allocation7 + $0x1c] sm:$0xf]
    %v1123 = vld [vmem:[#allocation7 + $0x20] sm:$0xf]
    %v1124 = vld [vmem:[#allocation7 + $0x24] sm:$0xf]
    %v1125 = vld [vmem:[#allocation7 + $0x28] sm:$0xf]
    %v1126 = vld [vmem:[#allocation7 + $0x2c] sm:$0xf]
    %v1127 = vld [vmem:[#allocation7 + $0x30] sm:$0xf]
    %v1128 = vld [vmem:[#allocation7 + $0x34] sm:$0xf]
    %v1129 = vld [vmem:[#allocation7 + $0x38] sm:$0xf]
    %v1130 = vld [vmem:[#allocation7 + $0x3c] sm:$0xf]
    %v1131 = vld [vmem:[#allocation7 + $0x40] sm:$0xf]
    %v1132 = vld [vmem:[#allocation7 + $0x44] sm:$0xf]
    %v1133 = vld [vmem:[#allocation7 + $0x48] sm:$0xf]
    %v1134 = vld [vmem:[#allocation7 + $0x4c] sm:$0xf]
    %v1135 = vld [vmem:[#allocation7 + $0x50] sm:$0xf]
    %v1136 = vld [vmem:[#allocation7 + $0x54] sm:$0xf]
    %v1137 = vld [vmem:[#allocation7 + $0x58] sm:$0xf]
    %v1138 = vld [vmem:[#allocation7 + $0x5c] sm:$0xf]
    %v1139 = vld [vmem:[#allocation7 + $0x60] sm:$0xf]
    %v1140 = vld [vmem:[#allocation7 + $0x64] sm:$0xf]
    %v1141 = vld [vmem:[#allocation7 + $0x68] sm:$0xf]
    %v1142 = vld [vmem:[#allocation7 + $0x6c] sm:$0xf]
    %v1143 = vld [vmem:[#allocation7 + $0x70] sm:$0xf]
    %v1144 = vld [vmem:[#allocation7 + $0x74] sm:$0xf]
    %v1145 = vld [vmem:[#allocation7 + $0x78] sm:$0xf]
    %v1146 = vld [vmem:[#allocation7 + $0x7c] sm:$0xf]
    %v1147 = vld [vmem:[%s4] sm:$0x1]
    %v1149 = vlaneseq
    %v1150 = vshrl.u32 %v1149, 7
    %v1151 = vsub.s32 0, %v1150
    %v1152 = vrot.slane %v1147, %v1151
    %v1186 = vunpack.c.l.b16 %v1115
    %v1187 = vunpack.c.l.b16 %v1116
    %v1188 = vunpack.c.l.b16 %v1117
    %v1189 = vunpack.c.l.b16 %v1118
    %v1190 = vunpack.c.l.b16 %v1119
    %v1191 = vunpack.c.l.b16 %v1120
    %v1192 = vunpack.c.l.b16 %v1121
    %v1193 = vunpack.c.l.b16 %v1122
    %v1194 = vunpack.c.l.b16 %v1123
    %v1195 = vunpack.c.l.b16 %v1124
    %v1196 = vunpack.c.l.b16 %v1125
    %v1197 = vunpack.c.l.b16 %v1126
    %v1198 = vunpack.c.l.b16 %v1127
    %v1199 = vunpack.c.l.b16 %v1128
    %v1200 = vunpack.c.l.b16 %v1129
    %v1201 = vunpack.c.l.b16 %v1130
    %v1202 = vunpack.c.l.b16 %v1131
    %v1203 = vunpack.c.l.b16 %v1132
    %v1204 = vunpack.c.l.b16 %v1133
    %v1205 = vunpack.c.l.b16 %v1134
    %v1206 = vunpack.c.l.b16 %v1135
    %v1207 = vunpack.c.l.b16 %v1136
    %v1208 = vunpack.c.l.b16 %v1137
    %v1209 = vunpack.c.l.b16 %v1138
    %v1210 = vunpack.c.l.b16 %v1139
    %v1211 = vunpack.c.l.b16 %v1140
    %v1212 = vunpack.c.l.b16 %v1141
    %v1213 = vunpack.c.l.b16 %v1142
    %v1214 = vunpack.c.l.b16 %v1143
    %v1215 = vunpack.c.l.b16 %v1144
    %v1216 = vunpack.c.l.b16 %v1145
    %v1217 = vunpack.c.l.b16 %v1146
    %v1218 = vpack.c.b16 %v1187, %v1186
    %v1219 = vpack.c.b16 %v1189, %v1188
    %v1220 = vpack.c.b16 %v1191, %v1190
    %v1221 = vpack.c.b16 %v1193, %v1192
    %v1222 = vpack.c.b16 %v1195, %v1194
    %v1223 = vpack.c.b16 %v1197, %v1196
    %v1224 = vpack.c.b16 %v1199, %v1198
    %v1225 = vpack.c.b16 %v1201, %v1200
    %v1226 = vpack.c.b16 %v1203, %v1202
    %v1227 = vpack.c.b16 %v1205, %v1204
    %v1228 = vpack.c.b16 %v1207, %v1206
    %v1229 = vpack.c.b16 %v1209, %v1208
    %v1230 = vpack.c.b16 %v1211, %v1210
    %v1231 = vpack.c.b16 %v1213, %v1212
    %v1232 = vpack.c.b16 %v1215, %v1214
    %v1233 = vpack.c.b16 %v1217, %v1216
    %1250 = vmatprep.subr.bf16.mxu0 0
    %1251 = vmatpush1.bf16.msra.mxu0 %v1218
    %1252 = vmatprep.subr.bf16.mxu0 0
    %1253 = vmatpush1.bf16.msra.mxu0 %v1219
    %1254 = vmatprep.subr.bf16.mxu0 0
    %1255 = vmatpush1.bf16.msra.mxu0 %v1220
    %1256 = vmatprep.subr.bf16.mxu0 0
    %1257 = vmatpush1.bf16.msra.mxu0 %v1221
    %1258 = vmatprep.subr.bf16.mxu0 0
    %1259 = vmatpush1.bf16.msra.mxu0 %v1222
    %1260 = vmatprep.subr.bf16.mxu0 0
    %1261 = vmatpush1.bf16.msra.mxu0 %v1223
    %1262 = vmatprep.subr.bf16.mxu0 0
    %1263 = vmatpush1.bf16.msra.mxu0 %v1224
    %1264 = vmatprep.subr.bf16.mxu0 0
    %1265 = vmatpush1.bf16.msra.mxu0 %v1225
    %1266 = vmatprep.subr.bf16.mxu0 0
    %1267 = vmatpush1.bf16.msra.mxu0 %v1226
    %1268 = vmatprep.subr.bf16.mxu0 0
    %1269 = vmatpush1.bf16.msra.mxu0 %v1227
    %1270 = vmatprep.subr.bf16.mxu0 0
    %1271 = vmatpush1.bf16.msra.mxu0 %v1228
    %1272 = vmatprep.subr.bf16.mxu0 0
    %1273 = vmatpush1.bf16.msra.mxu0 %v1229
    %1274 = vmatprep.subr.bf16.mxu0 0
    %1275 = vmatpush1.bf16.msra.mxu0 %v1230
    %1276 = vmatprep.subr.bf16.mxu0 0
    %1277 = vmatpush1.bf16.msra.mxu0 %v1231
    %1278 = vmatprep.subr.bf16.mxu0 0
    %1279 = vmatpush1.bf16.msra.mxu0 %v1232
    %1280 = vmatprep.subr.bf16.mxu0 0
    %1281 = vmatpush1.bf16.msra.mxu0 %v1233
    %1282 = vmatprep.mubr.bf16.mxu0 %v1114
    %1283 = vmatmul.mubr.bf16.gmra.mrb[0].mxu0 %v1113
    %v1284 = vpop.f32.mrb[0].mxu0
    %v1285 = vadd.f32 %v1152, %v1284
    %v1286 = vpop.f32.mrb[0].mxu0
    %v1287 = vpop.f32.mrb[0].mxu0
    %v1288 = vpop.f32.mrb[0].mxu0
    %1289 = vdwg.mxu0
    %v1290 = vpack.c.bf16 %v1285, %v1285
    %v1293 = vunpack.c.l.s4 1966171168
    %v1294 = vunpack.c.0.s8 %v1293
    %v1295 = vlaneseq
    %v1296 = vshrl.u32 %v1295, 7
    %v1297 = vsub.s32 %v1294, %v1296
    %v1298 = vrot.slane %v1290, %v1297
    %v1299 = vcombine.high %v1298, %v1298
    %v1301 = vunpack.c.l.s4 1966171168
    %v1302 = vunpack.c.0.s8 %v1301
    %v1303 = vlaneseq
    %v1304 = vshrl.u32 %v1303, 7
    %v1305 = vsub.s32 %v1302, %v1304
    %v1306 = vrot.slane %v1298, %v1305
    %v1308 = vunpack.c.l.s4 1966171168
    %v1309 = vunpack.c.0.s8 %v1308
    %v1310 = vlaneseq
    %v1311 = vshrl.u32 %v1310, 7
    %v1312 = vsub.s32 %v1309, %v1311
    %v1313 = vrot.slane %v1299, %v1312
    %v1314 = vcombine.high %v1306, %v1306
    %v1315 = vcombine.high %v1313, %v1313
    %1320 = vst [vmem:[#allocation8] sm:$0x1] %v1306
    %1321 = vst [vmem:[#allocation8 + $0x1] sm:$0x1] %v1313
    %1322 = vst [vmem:[#allocation8 + $0x2] sm:$0x1] %v1314
    %1323 = vst [vmem:[#allocation8 + $0x3] sm:$0x1] %v1315
    // Predicated region
    $region34: #{tpu_custom_call.1} parent=1 // pred_check
      _
    $region35: #{tpu_custom_call.1} parent=1 // pred_check_branch
      %1325 = sbr.rel (0) target = $region37
    $region36: #{tpu_custom_call.1} parent=1 // pred_region
      %s1327 = ssub.s32 64, 16
      %1328 = vsyncadd [#allocation4], %s1327
      %s1329 = sshll.u32 [#allocation8], 4
      %s1330 = int_to_ptr.vmem [resolvable:$true] %s1329
      %1335 = dma.vmem_to_hbm [thread:$0]  %s1330, 16, %s5, [#allocation4], 16, 16, 1
    $region37: #{tpu_custom_call.1} parent=1 // pred_fallthru
      _
    // Predicated region
    $region38: #{tpu_custom_call.1} parent=1 // pred_check
      _
    $region39: #{tpu_custom_call.1} parent=1 // pred_check_branch
      %1337 = sbr.rel (0) target = $region41
    $region40: #{tpu_custom_call.1} parent=1 // pred_region
      %1338 = dma.done [#allocation4], 64
    $region41: #{tpu_custom_call.1} parent=1 // pred_fallthru
      _
    %1339 = vsyncpa [#allocation3], 1
    %1340 = vsyncpa [#allocation6], 1
    %1341 = vsyncpa [#allocation4], 1

</llo_original>
